<compile_context>
chip_gen: v7x
topology: tpu7x:2x2x1
jax: 0.10.0
libtpu: 0.0.40
codegen_flags: <defaults>
</compile_context>

<pallas_src>
import functools

import jax
import jax.numpy as jnp
from jax.experimental import pallas as pl
from jax.experimental.pallas import tpu as pltpu


def _round_up(a, b):
    return ((a + b - 1) // b) * b


def _vmem_budget():
    """(per-block f32 byte budget, vmem_limit_bytes) chosen per TPU generation."""
    cap = 64 << 20  # conservative default (v7x per-TensorCore VMEM)
    try:
        cap = int(getattr(pltpu.get_tpu_info(), "vmem_capacity_bytes", cap))
    except Exception:
        pass
    if cap >= (96 << 20):            # v5e / v6e: 128 MiB physical VMEM
        return 8 << 20, 64 << 20
    return 4 << 20, 40 << 20         # v7x: 64 MiB per TensorCore


def _ln2d_kernel_dense(x_ref, w_ref, b_ref, o_ref, *, eps):
    """Fast path. x block: (TILE_N, C, TILE_S, 128); w/b: (C,) f32 scalars in SMEM."""
    x = x_ref[...].astype(jnp.float32)
    c = x.shape[1]
    mu = jnp.mean(x, axis=1, keepdims=True)          # C-1 full-vreg VALU adds (no XLU)
    xc = x - mu
    var = jnp.mean(xc * xc, axis=1, keepdims=True)   # biased variance (matches torch)
    y = xc * jax.lax.rsqrt(var + eps)                # EUP rsqrt
    for ci in range(c):                              # unrolled channel affine, dense stores
        o_ref[:, ci] = (w_ref[ci] * y[:, ci] + b_ref[ci]).astype(o_ref.dtype)


def _ln2d_kernel_sublane(x_ref, w_ref, b_ref, o_ref, *, eps):
    """Fallback (HW % 128 != 0). x block: (TILE_N, C, TILE_HW); C on sublanes."""
    x = x_ref[...].astype(jnp.float32)
    mu = jnp.mean(x, axis=1, keepdims=True)
    xc = x - mu
    var = jnp.mean(xc * xc, axis=1, keepdims=True)
    y = xc * jax.lax.rsqrt(var + eps)
    w = w_ref[...][None]                             # (1, C, 1) f32, VMEM-resident
    b = b_ref[...][None]
    o_ref[...] = (w * y + b).astype(o_ref.dtype)


def _batch_tile(n, per_image_bytes, budget):
    """Largest divisor of n whose block stays under the per-block byte budget."""
    tn = max(1, min(n, budget // max(per_image_bytes, 1)))
    while n % tn:
        tn -= 1
    return tn


def layernorm2d(x_nchw, weight, bias, eps=1e-6):
    """LayerNorm over the channel dim of an NCHW tensor (LayerNormFunction.forward)."""
    N, C, H, W = x_nchw.shape
    dtype = x_nchw.dtype
    HW = H * W
    block_budget, vmem_limit = _vmem_budget()

    if HW % 128 == 0:
        # ---- fast path: spatial on (sublane, lane); channels on a vreg-group axis ----
        S = HW // 128
        x_in = x_nchw.reshape(N, C, S, 128)                    # free, contiguous reshape
        bytes_per_s = C * 128 * 4                              # f32 bytes per S-row / image
        max_s = max(1, block_budget // bytes_per_s)
        tile_s = S if S <= max_s else max(8, (max_s // 8) * 8)  # multiple of 8, or full S
        per_image = C * _round_up(tile_s, 8) * 128 * 4          # include sublane padding
        tile_n = _batch_tile(N, per_image, block_budget)
        grid = (N // tile_n, pl.cdiv(S, tile_s))               # ragged S tail -> OOB mask
        block = (tile_n, C, tile_s, 128)
        idx = lambda n, s: (n, 0, s, 0)

        kernel = functools.partial(_ln2d_kernel_dense, eps=float(eps))
        w_arg = weight.reshape(C).astype(jnp.float32)
        b_arg = bias.reshape(C).astype(jnp.float32)
        w_spec = pl.BlockSpec(memory_space=pltpu.MemorySpace.SMEM)
        b_spec = pl.BlockSpec(memory_space=pltpu.MemorySpace.SMEM)
        out_struct = jax.ShapeDtypeStruct((N, C, S, 128), dtype)
    else:
        # ---- fallback: channels on sublanes; no padding, OOB-masked ragged tail ----
        x_in = x_nchw.reshape(N, C, HW)
        bytes_per_lane = _round_up(C, 8) * 4                   # sublane-padded bytes/lane
        max_lanes = max(128, block_budget // bytes_per_lane)
        tile_hw = HW if HW <= max_lanes else (max_lanes // 128) * 128
        per_image = _round_up(tile_hw, 128) * bytes_per_lane
        tile_n = _batch_tile(N, per_image, block_budget)
        grid = (N // tile_n, pl.cdiv(HW, tile_hw))
        block = (tile_n, C, tile_hw)
        idx = lambda n, s: (n, 0, s)

        kernel = functools.partial(_ln2d_kernel_sublane, eps=float(eps))
        w_arg = weight.reshape(C, 1).astype(jnp.float32)
        b_arg = bias.reshape(C, 1).astype(jnp.float32)
        w_spec = pl.BlockSpec((C, 1), lambda n, s: (0, 0))     # resident in VMEM
        b_spec = pl.BlockSpec((C, 1), lambda n, s: (0, 0))
        out_struct = jax.ShapeDtypeStruct((N, C, HW), dtype)

    out = pl.pallas_call(
        kernel,
        out_shape=out_struct,
        grid_spec=pltpu.PrefetchScalarGridSpec(
            num_scalar_prefetch=0,
            grid=grid,
            in_specs=[pl.BlockSpec(block, idx), w_spec, b_spec],
            out_specs=pl.BlockSpec(block, idx),
        ),
        compiler_params=pltpu.CompilerParams(
            dimension_semantics=("parallel", "parallel"),
            vmem_limit_bytes=vmem_limit,
        ),
    )(x_in, w_arg, b_arg)

    return out.reshape(N, C, H, W)


def layernorm2d_ref(x, weight, bias, eps=1e-6):
    """Pure-JAX reference mirroring the PyTorch LayerNormFunction.forward."""
    mu = jnp.mean(x, axis=1, keepdims=True)
    var = jnp.mean((x - mu) ** 2, axis=1, keepdims=True)
    y = (x - mu) / jnp.sqrt(var + eps)
    C = x.shape[1]
    return weight.reshape(1, C, 1, 1) * y + bias.reshape(1, C, 1, 1)


# TODO(synk): only the forward pass is implemented; LayerNormFunction.backward is out of scope.

if __name__ == "__main__":
    key = jax.random.PRNGKey(0)
    N, C, H, W = 2, 4, 16, 16

    kx, kw, kb = jax.random.split(key, 3)
    x = jax.random.normal(kx, (N, C, H, W), dtype=jnp.float32)
    # PyTorch init is ones/zeros; perturb slightly so the affine part is exercised.
    weight = jnp.ones((C,), jnp.float32) + 0.1 * jax.random.normal(kw, (C,), jnp.float32)
    bias = jnp.zeros((C,), jnp.float32) + 0.1 * jax.random.normal(kb, (C,), jnp.float32)

    # Dense fast path (HW = 256, multiple of 128), single grid step.
    out = jax.block_until_ready(layernorm2d(x, weight, bias, eps=1e-6))
    ref = layernorm2d_ref(x, weight, bias, eps=1e-6)
    assert out.shape == (N, C, H, W)
    assert jnp.allclose(out, ref, atol=1e-5, rtol=1e-5), "mismatch (dense path, S<8)"

    # Dense fast path with a full 8-sublane spatial tile (HW = 1024, S = 8).
    x3 = jax.random.normal(jax.random.PRNGKey(2), (2, C, 32, 32), dtype=jnp.float32)
    out3 = jax.block_until_ready(layernorm2d(x3, weight, bias, eps=1e-6))
    ref3 = layernorm2d_ref(x3, weight, bias, eps=1e-6)
    assert jnp.allclose(out3, ref3, atol=1e-5, rtol=1e-5), "mismatch (dense path, S>=8)"

    # No-pad fallback path (HW = 144, not a multiple of 128).
    x2 = jax.random.normal(jax.random.PRNGKey(1), (2, C, 12, 12), dtype=jnp.float32)
    out2 = jax.block_until_ready(layernorm2d(x2, weight, bias, eps=1e-6))
    ref2 = layernorm2d_ref(x2, weight, bias, eps=1e-6)
    assert jnp.allclose(out2, ref2, atol=1e-5, rtol=1e-5), "mismatch (fallback path)"

    print("KERNEL_OK")
</pallas_src>

<mosaic_0001>
module attributes {stable_mosaic.version = 11 : i64} {
  func.func @_ln2d_kernel_dense(%arg0: i32, %arg1: i32, %arg2: memref<2x4x2x128xf32, #tpu.memory_space<vmem>>, %arg3: memref<4xf32, #tpu.memory_space<smem>>, %arg4: memref<4xf32, #tpu.memory_space<smem>>, %arg5: memref<2x4x2x128xf32, #tpu.memory_space<vmem>>) attributes {dimension_semantics = [#tpu.dimension_semantics<parallel>, #tpu.dimension_semantics<parallel>], iteration_bounds = array<i64: 1, 1>, scalar_prefetch = 0 : i64, scratch_operands = 0 : i64, tpu.core_type = #tpu.core_type<tc>, window_params = [{transform_indices = @transform_0, window_bounds = array<i64: 2, 4, 2, 128>}, {transform_indices = @transform_1, window_bounds = array<i64: 4>}, {transform_indices = @transform_2, window_bounds = array<i64: 4>}, {transform_indices = @transform_3, window_bounds = array<i64: 2, 4, 2, 128>}]} {
    %c0 = arith.constant 0 : index
    %c0_0 = arith.constant 0 : index
    %c0_1 = arith.constant 0 : index
    %c0_2 = arith.constant 0 : index
    %0 = vector.load %arg2[%c0, %c0_0, %c0_1, %c0_2] : memref<2x4x2x128xf32, #tpu.memory_space<vmem>>, vector<2x4x2x128xf32>
    %cst = arith.constant dense<0.000000e+00> : vector<2x2x128xf32>
    %1 = vector.multi_reduction <add>, %0, %cst [1] : vector<2x4x2x128xf32> to vector<2x2x128xf32>
    %2 = vector.shape_cast %1 : vector<2x2x128xf32> to vector<2x1x2x128xf32>
    %cst_3 = arith.constant 4.000000e+00 : f32
    %3 = vector.broadcast %cst_3 : f32 to vector<2x1x2x128xf32>
    %4 = arith.divf %2, %3 : vector<2x1x2x128xf32>
    %5 = vector.broadcast %4 : vector<2x1x2x128xf32> to vector<2x4x2x128xf32>
    %6 = arith.subf %0, %5 : vector<2x4x2x128xf32>
    %7 = arith.mulf %6, %6 : vector<2x4x2x128xf32>
    %cst_4 = arith.constant dense<0.000000e+00> : vector<2x2x128xf32>
    %8 = vector.multi_reduction <add>, %7, %cst_4 [1] : vector<2x4x2x128xf32> to vector<2x2x128xf32>
    %9 = vector.shape_cast %8 : vector<2x2x128xf32> to vector<2x1x2x128xf32>
    %cst_5 = arith.constant 4.000000e+00 : f32
    %10 = vector.broadcast %cst_5 : f32 to vector<2x1x2x128xf32>
    %11 = arith.divf %9, %10 : vector<2x1x2x128xf32>
    %cst_6 = arith.constant 9.99999997E-7 : f32
    %12 = vector.broadcast %cst_6 : f32 to vector<2x1x2x128xf32>
    %13 = arith.addf %11, %12 : vector<2x1x2x128xf32>
    %14 = math.rsqrt %13 : vector<2x1x2x128xf32>
    %15 = vector.broadcast %14 : vector<2x1x2x128xf32> to vector<2x4x2x128xf32>
    %16 = arith.mulf %6, %15 : vector<2x4x2x128xf32>
    %c0_7 = arith.constant 0 : index
    %17 = memref.load %arg3[%c0_7] : memref<4xf32, #tpu.memory_space<smem>>
    %18 = vector.extract_strided_slice %16 {offsets = [0, 0, 0, 0], sizes = [2, 1, 2, 128], strides = [1, 1, 1, 1]} : vector<2x4x2x128xf32> to vector<2x1x2x128xf32>
    %19 = vector.shape_cast %18 : vector<2x1x2x128xf32> to vector<2x2x128xf32>
    %20 = vector.broadcast %17 : f32 to vector<2x2x128xf32>
    %21 = arith.mulf %20, %19 : vector<2x2x128xf32>
    %c0_8 = arith.constant 0 : index
    %22 = memref.load %arg4[%c0_8] : memref<4xf32, #tpu.memory_space<smem>>
    %23 = vector.broadcast %22 : f32 to vector<2x2x128xf32>
    %24 = arith.addf %21, %23 : vector<2x2x128xf32>
    %c0_9 = arith.constant 0 : index
    %c0_10 = arith.constant 0 : index
    %c0_11 = arith.constant 0 : index
    %c0_12 = arith.constant 0 : index
    %25 = vector.load %arg5[%c0_9, %c0_10, %c0_11, %c0_12] : memref<2x4x2x128xf32, #tpu.memory_space<vmem>>, vector<2x1x2x128xf32>
    %26 = vector.shape_cast %25 : vector<2x1x2x128xf32> to vector<2x2x128xf32>
    %27 = vector.shape_cast %24 : vector<2x2x128xf32> to vector<2x1x2x128xf32>
    tpu.vector_store %arg5[%c0_9, %c0_10, %c0_11, %c0_12], %27 {strides = array<i32>} : memref<2x4x2x128xf32, #tpu.memory_space<vmem>>, vector<2x1x2x128xf32>,
    %c1 = arith.constant 1 : index
    %28 = memref.load %arg3[%c1] : memref<4xf32, #tpu.memory_space<smem>>
    %29 = vector.extract_strided_slice %16 {offsets = [0, 1, 0, 0], sizes = [2, 1, 2, 128], strides = [1, 1, 1, 1]} : vector<2x4x2x128xf32> to vector<2x1x2x128xf32>
    %30 = vector.shape_cast %29 : vector<2x1x2x128xf32> to vector<2x2x128xf32>
    %31 = vector.broadcast %28 : f32 to vector<2x2x128xf32>
    %32 = arith.mulf %31, %30 : vector<2x2x128xf32>
    %c1_13 = arith.constant 1 : index
    %33 = memref.load %arg4[%c1_13] : memref<4xf32, #tpu.memory_space<smem>>
    %34 = vector.broadcast %33 : f32 to vector<2x2x128xf32>
    %35 = arith.addf %32, %34 : vector<2x2x128xf32>
    %c0_14 = arith.constant 0 : index
    %c1_15 = arith.constant 1 : index
    %c0_16 = arith.constant 0 : index
    %c0_17 = arith.constant 0 : index
    %36 = vector.load %arg5[%c0_14, %c1_15, %c0_16, %c0_17] : memref<2x4x2x128xf32, #tpu.memory_space<vmem>>, vector<2x1x2x128xf32>
    %37 = vector.shape_cast %36 : vector<2x1x2x128xf32> to vector<2x2x128xf32>
    %38 = vector.shape_cast %35 : vector<2x2x128xf32> to vector<2x1x2x128xf32>
    tpu.vector_store %arg5[%c0_14, %c1_15, %c0_16, %c0_17], %38 {strides = array<i32>} : memref<2x4x2x128xf32, #tpu.memory_space<vmem>>, vector<2x1x2x128xf32>,
    %c2 = arith.constant 2 : index
    %39 = memref.load %arg3[%c2] : memref<4xf32, #tpu.memory_space<smem>>
    %40 = vector.extract_strided_slice %16 {offsets = [0, 2, 0, 0], sizes = [2, 1, 2, 128], strides = [1, 1, 1, 1]} : vector<2x4x2x128xf32> to vector<2x1x2x128xf32>
    %41 = vector.shape_cast %40 : vector<2x1x2x128xf32> to vector<2x2x128xf32>
    %42 = vector.broadcast %39 : f32 to vector<2x2x128xf32>
    %43 = arith.mulf %42, %41 : vector<2x2x128xf32>
    %c2_18 = arith.constant 2 : index
    %44 = memref.load %arg4[%c2_18] : memref<4xf32, #tpu.memory_space<smem>>
    %45 = vector.broadcast %44 : f32 to vector<2x2x128xf32>
    %46 = arith.addf %43, %45 : vector<2x2x128xf32>
    %c0_19 = arith.constant 0 : index
    %c2_20 = arith.constant 2 : index
    %c0_21 = arith.constant 0 : index
    %c0_22 = arith.constant 0 : index
    %47 = vector.load %arg5[%c0_19, %c2_20, %c0_21, %c0_22] : memref<2x4x2x128xf32, #tpu.memory_space<vmem>>, vector<2x1x2x128xf32>
    %48 = vector.shape_cast %47 : vector<2x1x2x128xf32> to vector<2x2x128xf32>
    %49 = vector.shape_cast %46 : vector<2x2x128xf32> to vector<2x1x2x128xf32>
    tpu.vector_store %arg5[%c0_19, %c2_20, %c0_21, %c0_22], %49 {strides = array<i32>} : memref<2x4x2x128xf32, #tpu.memory_space<vmem>>, vector<2x1x2x128xf32>,
    %c3 = arith.constant 3 : index
    %50 = memref.load %arg3[%c3] : memref<4xf32, #tpu.memory_space<smem>>
    %51 = vector.extract_strided_slice %16 {offsets = [0, 3, 0, 0], sizes = [2, 1, 2, 128], strides = [1, 1, 1, 1]} : vector<2x4x2x128xf32> to vector<2x1x2x128xf32>
    %52 = vector.shape_cast %51 : vector<2x1x2x128xf32> to vector<2x2x128xf32>
    %53 = vector.broadcast %50 : f32 to vector<2x2x128xf32>
    %54 = arith.mulf %53, %52 : vector<2x2x128xf32>
    %c3_23 = arith.constant 3 : index
    %55 = memref.load %arg4[%c3_23] : memref<4xf32, #tpu.memory_space<smem>>
    %56 = vector.broadcast %55 : f32 to vector<2x2x128xf32>
    %57 = arith.addf %54, %56 : vector<2x2x128xf32>
    %c0_24 = arith.constant 0 : index
    %c3_25 = arith.constant 3 : index
    %c0_26 = arith.constant 0 : index
    %c0_27 = arith.constant 0 : index
    %58 = vector.load %arg5[%c0_24, %c3_25, %c0_26, %c0_27] : memref<2x4x2x128xf32, #tpu.memory_space<vmem>>, vector<2x1x2x128xf32>
    %59 = vector.shape_cast %58 : vector<2x1x2x128xf32> to vector<2x2x128xf32>
    %60 = vector.shape_cast %57 : vector<2x2x128xf32> to vector<2x1x2x128xf32>
    tpu.vector_store %arg5[%c0_24, %c3_25, %c0_26, %c0_27], %60 {strides = array<i32>} : memref<2x4x2x128xf32, #tpu.memory_space<vmem>>, vector<2x1x2x128xf32>,
    return
  }
  func.func @transform_0(%arg0: i32, %arg1: i32) -> (i32, i32, i32, i32) {
    %c0_i32 = arith.constant 0 : i32
    %c0_i32_0 = arith.constant 0 : i32
    %c0_i32_1 = arith.constant 0 : i32
    return %arg0, %c0_i32, %arg1, %c0_i32_0 : i32, i32, i32, i32
  }
  func.func @transform_1(%arg0: i32, %arg1: i32) -> i32 {
    %c0_i32 = arith.constant 0 : i32
    %c0_i32_0 = arith.constant 0 : i32
    return %c0_i32 : i32
  }
  func.func @transform_2(%arg0: i32, %arg1: i32) -> i32 {
    %c0_i32 = arith.constant 0 : i32
    %c0_i32_0 = arith.constant 0 : i32
    return %c0_i32 : i32
  }
  func.func @transform_3(%arg0: i32, %arg1: i32) -> (i32, i32, i32, i32) {
    %c0_i32 = arith.constant 0 : i32
    %c0_i32_0 = arith.constant 0 : i32
    %c0_i32_1 = arith.constant 0 : i32
    return %arg0, %c0_i32, %arg1, %c0_i32_0 : i32, i32, i32, i32
  }
}

</mosaic_0001>

<llo_original>
// kernel: tpu_custom_call.1
$region0: #{tpu_custom_call.1}
  #allocation0 [shape = 'u32[]', space=smem, size = 0x4, offset = 0x4, fixed_abs, tag = 'smem constant byte address 0x4 - core index']
  #allocation1 [shape = 'u32[144,128]{1,0:T(1,128)}', space=vmem, size = 0x12000, scoped, tag = 'internal scratch']
  %s0 = inlined_call_operand.hbm [shape: f32[2,4,2,128], index: 0, kind: input, shape index: {}]
  %s1 = inlined_call_operand.vmem [shape: f32[4], index: 1, kind: input, shape index: {}]
  %s2 = inlined_call_operand.vmem [shape: f32[4], index: 2, kind: input, shape index: {}]
  %s3 = inlined_call_operand.hbm [shape: f32[2,4,2,128], index: 3, kind: output, shape index: {}]
  %s4 = sld [smem:[#allocation0]]
  $region34: #{tpu_custom_call.1} parent=0
    _
  %s6 = ssub.s32 1, %s4
  %s7 = scalar_select 0, %s6, %s4
  $region1: #{tpu_custom_call.1} parent=0
    #allocation2 [shape = 'u8[8192]{0}', space=vmem, size = 0x2000, scoped, tag = 'input window, operand 0, single buffered']
    #allocation3 [shape = 's32[1]{0}', space=sflag, size = 0x4, scoped, tag = 'scoped memory for tpu_custom_call.1']
    #allocation4 [shape = 's32[1]{0}', space=sflag, size = 0x4, scoped, tag = 'scoped memory for tpu_custom_call.1']
    #allocation5 [shape = 's32[1]{0}', space=sflag, size = 0x4, scoped, tag = 'scoped memory for tpu_custom_call.1']
    #allocation6 [shape = 'u8[512]{0}', space=smem, size = 0x200, scoped, tag = 'input window, operand 1, single buffered']
    #allocation7 [shape = 'u8[512]{0}', space=smem, size = 0x200, scoped, tag = 'input window, operand 2, single buffered']
    #allocation8 [shape = 's32[1]{0}', space=sflag, size = 0x4, scoped, tag = 'scoped memory for tpu_custom_call.1']
    #allocation9 [shape = 'u8[8192]{0}', space=vmem, size = 0x2000, scoped, tag = 'output window, operand 0, single buffered']
    %8 = vsyncpa [#allocation3], 0
    %9 = vsyncpa [#allocation5], 0
    %10 = vsyncpa [#allocation8], 0
    %11 = vsyncpa [#allocation4], 0
    // Predicated region
    $region2: #{tpu_custom_call.1} parent=1 // pred_check
      _
    $region3: #{tpu_custom_call.1} parent=1 // pred_check_branch
      %13 = sbr.rel (0) target = $region5
    $region4: #{tpu_custom_call.1} parent=1 // pred_region
      %s15 = ssub.s32 256, 256
      %16 = vsyncadd [#allocation3], %s15
      %s17 = sshll.u32 [#allocation2], 4
      %s18 = int_to_ptr.vmem [resolvable:$true] %s17
      %23 = dma.hbm_to_vmem [thread:$0]  %s0, 256, %s18, [#allocation3], 32, 32, 2
    $region5: #{tpu_custom_call.1} parent=1 // pred_fallthru
      _
    // Predicated region
    $region6: #{tpu_custom_call.1} parent=1 // pred_check
      _
    $region7: #{tpu_custom_call.1} parent=1 // pred_check_branch
      %25 = sbr.rel (0) target = $region9
    $region8: #{tpu_custom_call.1} parent=1 // pred_region
      %s27 = ssub.s32 16, 16
      %28 = vsyncadd [#allocation5], %s27
      %s30 = sshll.u32 %s1, 4
      %s31 = int_to_ptr.vmem [resolvable:$true] %s30
      %33 = dma.vmem_to_smem %s31, 16, [#allocation6], [#allocation5]
    $region9: #{tpu_custom_call.1} parent=1 // pred_fallthru
      _
    // Predicated region
    $region10: #{tpu_custom_call.1} parent=1 // pred_check
      _
    $region11: #{tpu_custom_call.1} parent=1 // pred_check_branch
      %35 = sbr.rel (0) target = $region13
    $region12: #{tpu_custom_call.1} parent=1 // pred_region
      %s37 = ssub.s32 16, 16
      %38 = vsyncadd [#allocation8], %s37
      %s40 = sshll.u32 %s2, 4
      %s41 = int_to_ptr.vmem [resolvable:$true] %s40
      %43 = dma.vmem_to_smem %s41, 16, [#allocation7], [#allocation8]
    $region13: #{tpu_custom_call.1} parent=1 // pred_fallthru
      _
    // Predicated region
    $region14: #{tpu_custom_call.1} parent=1 // pred_check
      _
    $region15: #{tpu_custom_call.1} parent=1 // pred_check_branch
      %45 = sbr.rel (0) target = $region17
    $region16: #{tpu_custom_call.1} parent=1 // pred_region
      %46 = dma.done [#allocation3], 256
    $region17: #{tpu_custom_call.1} parent=1 // pred_fallthru
      _
    // Predicated region
    $region18: #{tpu_custom_call.1} parent=1 // pred_check
      _
    $region19: #{tpu_custom_call.1} parent=1 // pred_check_branch
      %48 = sbr.rel (0) target = $region21
    $region20: #{tpu_custom_call.1} parent=1 // pred_region
      %49 = dma.done [#allocation5], 16
    $region21: #{tpu_custom_call.1} parent=1 // pred_fallthru
      _
    // Predicated region
    $region22: #{tpu_custom_call.1} parent=1 // pred_check
      _
    $region23: #{tpu_custom_call.1} parent=1 // pred_check_branch
      %51 = sbr.rel (0) target = $region25
    $region24: #{tpu_custom_call.1} parent=1 // pred_region
      %52 = dma.done [#allocation8], 16
    $region25: #{tpu_custom_call.1} parent=1 // pred_fallthru
      _
    %53 = sfence
    %v54 = vld [vmem:[#allocation2] sm:$0x3]
    %v55 = vld [vmem:[#allocation2 + $0x2] sm:$0x3]
    %v56 = vld [vmem:[#allocation2 + $0x4] sm:$0x3]
    %v57 = vld [vmem:[#allocation2 + $0x6] sm:$0x3]
    %v58 = vld [vmem:[#allocation2 + $0x8] sm:$0x3]
    %v59 = vld [vmem:[#allocation2 + $0xa] sm:$0x3]
    %v60 = vld [vmem:[#allocation2 + $0xc] sm:$0x3]
    %v61 = vld [vmem:[#allocation2 + $0xe] sm:$0x3]
    %vm62 = vcmask 1041408
    %v63 = vsel %vm62, %v54, 0.0
    %v64 = vsel %vm62, %v55, 0.0
    %v65 = vadd.f32 %v63, %v64
    %v66 = vsel %vm62, %v56, 0.0
    %v67 = vadd.f32 %v65, %v66
    %v68 = vsel %vm62, %v57, 0.0
    %v69 = vadd.f32 %v67, %v68
    %v70 = vsel %vm62, %v58, 0.0
    %v71 = vsel %vm62, %v59, 0.0
    %v72 = vadd.f32 %v70, %v71
    %v73 = vsel %vm62, %v60, 0.0
    %v74 = vadd.f32 %v72, %v73
    %v75 = vsel %vm62, %v61, 0.0
    %v76 = vadd.f32 %v74, %v75
    %v77 = vrcp.pop 4.0
    %v78 = vmul.f32 %v69, %v77
    %v79 = vmul.f32 %v76, %v77
    %v80 = vsub.f32 %v54, %v78
    %v81 = vsub.f32 %v55, %v78
    %v82 = vsub.f32 %v56, %v78
    %v83 = vsub.f32 %v57, %v78
    %v84 = vsub.f32 %v58, %v79
    %v85 = vsub.f32 %v59, %v79
    %v86 = vsub.f32 %v60, %v79
    %v87 = vsub.f32 %v61, %v79
    %v88 = vmul.f32 %v80, %v80
    %v89 = vmul.f32 %v81, %v81
    %v90 = vmul.f32 %v82, %v82
    %v91 = vmul.f32 %v83, %v83
    %v92 = vmul.f32 %v84, %v84
    %v93 = vmul.f32 %v85, %v85
    %v94 = vmul.f32 %v86, %v86
    %v95 = vmul.f32 %v87, %v87
    %v96 = vsel %vm62, %v88, 0.0
    %v97 = vsel %vm62, %v89, 0.0
    %v98 = vadd.f32 %v96, %v97
    %v99 = vsel %vm62, %v90, 0.0
    %v100 = vadd.f32 %v98, %v99
    %v101 = vsel %vm62, %v91, 0.0
    %v102 = vadd.f32 %v100, %v101
    %v103 = vsel %vm62, %v92, 0.0
    %v104 = vsel %vm62, %v93, 0.0
    %v105 = vadd.f32 %v103, %v104
    %v106 = vsel %vm62, %v94, 0.0
    %v107 = vadd.f32 %v105, %v106
    %v108 = vsel %vm62, %v95, 0.0
    %v109 = vadd.f32 %v107, %v108
    %v110 = vmul.f32 %v102, %v77
    %v111 = vmul.f32 %v109, %v77
    %v112 = vadd.f32 %v110, 1e-06
    %v113 = vadd.f32 %v111, 1e-06
    %v114 = vrsqrt.pop %v112
    %v115 = vrsqrt.pop %v113
    %v116 = vmul.f32 %v80, %v114
    %v117 = vmul.f32 %v81, %v114
    %v118 = vmul.f32 %v82, %v114
    %v119 = vmul.f32 %v83, %v114
    %v120 = vmul.f32 %v84, %v115
    %v121 = vmul.f32 %v85, %v115
    %v122 = vmul.f32 %v86, %v115
    %v123 = vmul.f32 %v87, %v115
    %s124 = sld [smem:[#allocation6]]
    %v125 = vstv %s124
    %v126 = vmul.f32 %v125, %v116
    %v127 = vmul.f32 %v125, %v120
    %s128 = sld [smem:[#allocation7]]
    %v129 = vstv %s128
    %v130 = vadd.f32 %v126, %v129
    %v131 = vadd.f32 %v127, %v129
    %132 = vst [vmem:[#allocation9] sm:$0x3] %v130
    %133 = vst [vmem:[#allocation9 + $0x8] sm:$0x3] %v131
    %s134 = sld [smem:[#allocation6 + $0x1]]
    %v135 = vstv %s134
    %v136 = vmul.f32 %v135, %v117
    %v137 = vmul.f32 %v135, %v121
    %s138 = sld [smem:[#allocation7 + $0x1]]
    %v139 = vstv %s138
    %v140 = vadd.f32 %v136, %v139
    %v141 = vadd.f32 %v137, %v139
    %s142 = scalar_lea.vmem [#allocation9], 2
    %143 = vst [vmem:[%s142] sm:$0x3] %v140
    %144 = vst [vmem:[%s142 + $0x8] sm:$0x3] %v141
    %s145 = sld [smem:[#allocation6 + $0x2]]
    %v146 = vstv %s145
    %v147 = vmul.f32 %v146, %v118
    %v148 = vmul.f32 %v146, %v122
    %s149 = sld [smem:[#allocation7 + $0x2]]
    %v150 = vstv %s149
    %v151 = vadd.f32 %v147, %v150
    %v152 = vadd.f32 %v148, %v150
    %s153 = scalar_lea.vmem [#allocation9], 4
    %154 = vst [vmem:[%s153] sm:$0x3] %v151
    %155 = vst [vmem:[%s153 + $0x8] sm:$0x3] %v152
    %s156 = sld [smem:[#allocation6 + $0x3]]
    %v157 = vstv %s156
    %v158 = vmul.f32 %v157, %v119
    %v159 = vmul.f32 %v157, %v123
    %s160 = sld [smem:[#allocation7 + $0x3]]
    %v161 = vstv %s160
    %v162 = vadd.f32 %v158, %v161
    %v163 = vadd.f32 %v159, %v161
    %s164 = scalar_lea.vmem [#allocation9], 6
    %165 = vst [vmem:[%s164] sm:$0x3] %v162
    %166 = vst [vmem:[%s164 + $0x8] sm:$0x3] %v163
    // Predicated region
    $region26: #{tpu_custom_call.1} parent=1 // pred_check
      _
    $region27: #{tpu_custom_call.1} parent=1 // pred_check_branch
      %168 = sbr.rel (0) target = $region29
    $region28: #{tpu_custom_call.1} parent=1 // pred_region
      %s170 = ssub.s32 256, 256
      %171 = vsyncadd [#allocation4], %s170
      %s172 = sshll.u32 [#allocation9], 4
      %s173 = int_to_ptr.vmem [resolvable:$true] %s172
      %178 = dma.vmem_to_hbm [thread:$0]  %s173, 256, %s3, [#allocation4], 32, 32, 2
    $region29: #{tpu_custom_call.1} parent=1 // pred_fallthru
      _
    // Predicated region
    $region30: #{tpu_custom_call.1} parent=1 // pred_check
      _
    $region31: #{tpu_custom_call.1} parent=1 // pred_check_branch
      %180 = sbr.rel (0) target = $region33
    $region32: #{tpu_custom_call.1} parent=1 // pred_region
      %181 = dma.done [#allocation4], 256
    $region33: #{tpu_custom_call.1} parent=1 // pred_fallthru
      _
    %182 = vsyncpa [#allocation3], 1
    %183 = vsyncpa [#allocation4], 1
    %184 = vsyncpa [#allocation5], 1
    %185 = vsyncpa [#allocation8], 1

</llo_original>
